<compile_context>
chip_gen: v6e
topology: v6e:2x2x1
jax: 0.10.0
libtpu: 0.0.40
codegen_flags: <defaults>
</compile_context>

<pallas_src>
import functools

import jax
import jax.numpy as jnp
from jax.experimental import pallas as pl
from jax.experimental.pallas import tpu as pltpu


def _round_up(x, m):
    return ((x + m - 1) // m) * m


def _vmem_capacity_bytes():
    try:
        return int(pltpu.get_tpu_info().vmem_capacity_bytes)
    except Exception:
        return 64 << 20  # conservative fallback (v7x per-TC VMEM)


def _pool_kernel(x_ref, o_ref, acc_ref, *, hw, hw_tile, inv_hw, ragged):
    # x_ref:   (1, C, HW_TILE) activation tile for batch element n
    # o_ref:   (1, C, 1)       pooled mean for batch element n
    # acc_ref: (C, 1) f32      running per-channel sum (persistent VMEM scratch)
    s = pl.program_id(1)

    @pl.when(s == 0)
    def _init():
        acc_ref[...] = jnp.zeros_like(acc_ref)

    xt = x_ref[0].astype(jnp.float32)                      # (C, HW_TILE)
    if ragged:
        # Only emitted when HW % HW_TILE != 0: mask the out-of-bounds lanes of
        # the (partial) last tile.  Pallas does NOT zero OOB lanes of an edge
        # block, so this mask is required for correctness without a pad copy.
        limit = hw - s * hw_tile                           # >= hw_tile except on last step
        lane = jax.lax.broadcasted_iota(jnp.int32, xt.shape, 1)
        xt = jnp.where(lane < limit, xt, 0.0)

    # Per-tile cross-lane reduce (XLU, free in a DMA-bound kernel) into a tiny
    # (C, 1) accumulator — no full-width (C, HW_TILE) scratch needed.
    acc_ref[...] += jnp.sum(xt, axis=-1, keepdims=True)

    @pl.when(s == pl.num_programs(1) - 1)
    def _finalize():
        o_ref[...] = (acc_ref[...] * inv_hw)[None].astype(o_ref.dtype)


def _gate_kernel(p_ref, w1t_ref, b1_ref, w2t_ref, b2_ref, o_ref):
    # p_ref: (N, C) pooled means (lane-dense); weights pre-transposed so both
    # matmuls run in row orientation, batched over N on the MXU.
    p = p_ref[...].astype(jnp.float32)                                   # (N, C)
    h = jnp.dot(p, w1t_ref[...], preferred_element_type=jnp.float32)     # (N, C_mid)
    h = jnp.maximum(h + b1_ref[...], 0.0)
    o = jnp.dot(h, w2t_ref[...], preferred_element_type=jnp.float32)     # (N, C)
    o = o + b2_ref[...]
    o_ref[...] = (1.0 / (1.0 + jnp.exp(-o))).astype(o_ref.dtype)


def se_forward(x, w1, b1, w2, b2, *, hw_tile=None):
    """x: (N, C, H, W). w1: (C_mid, C), b1: (C_mid,), w2: (C, C_mid), b2: (C,).

    Returns the SE gate of shape (N, C, 1, 1) in float32.
    """
    N, C, H, W = x.shape
    C_mid = w1.shape[0]
    HW = H * W

    # Metadata-only merge of the trailing spatial dims — no HBM copy, no pad.
    x_flat = x.reshape(N, C, HW)

    vmem_cap = _vmem_capacity_bytes()
    itemsize = x.dtype.itemsize
    C8 = _round_up(C, 8)

    # Lane-dense spatial tile: multiple of 128, as large as the per-generation
    # VMEM budget allows for the double-buffered x blocks (dtype-aware).
    if hw_tile is None:
        tile_guard = max(vmem_cap // 3, 4 << 20)
        hw_cap = max(128, _round_up(HW, 128))
        hw_tile = 128
        for cand in (2048, 1024, 512, 256, 128):
            if cand <= hw_cap and 2 * C8 * cand * itemsize <= tile_guard:
                hw_tile = cand
                break
    hw_tile = max(128, _round_up(hw_tile, 128))
    num_s = pl.cdiv(HW, hw_tile)
    ragged = (HW % hw_tile) != 0

    pool_kernel = functools.partial(
        _pool_kernel, hw=HW, hw_tile=hw_tile, inv_hw=1.0 / float(HW), ragged=ragged)

    # Explicit VMEM budget with headroom: 2x double-buffered x blocks + padded
    # accumulator + output buffers; capped by the chip's actual VMEM capacity
    # (leaves headroom for compiler-internal scratch on v7x's 64 MiB).
    x_block_bytes = C8 * hw_tile * itemsize
    acc_bytes = C8 * 128 * 4
    out_bytes = C8 * 128 * 4
    vmem_need = 2 * x_block_bytes + acc_bytes + 2 * out_bytes + (2 << 20)
    vmem_limit = int(min(max(vmem_need, 16 << 20), int(vmem_cap * 0.65)))

    # TODO(synk): for v7x with N < 2 the mem-bound stream uses only one of the
    # two TensorCores; splitting the spatial reduction across cores with a
    # cross-core combine would fix that.
    # TODO(synk): for C < 8 a (N*C, HW) row-flattened layout would fill all 8
    # sublanes per vreg/DMA; kept (N, C, HW) for a general layout.
    pooled = pl.pallas_call(
        pool_kernel,
        out_shape=jax.ShapeDtypeStruct((N, C, 1), jnp.float32),
        grid_spec=pltpu.PrefetchScalarGridSpec(
            num_scalar_prefetch=0,
            grid=(N, num_s),
            in_specs=[
                # x tiles; bump to pipeline_mode=pl.Buffered(3) only if
                # profiling shows exposed DMA around the per-batch epilogue.
                pl.BlockSpec((1, C, hw_tile), lambda n, s: (n, 0, s)),
            ],
            out_specs=pl.BlockSpec((1, C, 1), lambda n, s: (n, 0, 0)),
            scratch_shapes=[pltpu.VMEM((C, 1), jnp.float32)],
        ),
        compiler_params=pltpu.CompilerParams(
            dimension_semantics=("parallel", "arbitrary"),
            vmem_limit_bytes=vmem_limit,
        ),
    )(x_flat)

    # Tiny (N*C elements) relayout between the two kernels.
    pooled_nc = pooled.reshape(N, C)

    w1t = w1.T.astype(jnp.float32)                # (C, C_mid)
    w2t = w2.T.astype(jnp.float32)                # (C_mid, C)
    b1r = b1.reshape(1, C_mid).astype(jnp.float32)
    b2r = b2.reshape(1, C).astype(jnp.float32)

    gate = pl.pallas_call(
        _gate_kernel,
        out_shape=jax.ShapeDtypeStruct((N, C), jnp.float32),
        grid_spec=pltpu.PrefetchScalarGridSpec(
            num_scalar_prefetch=0,
            grid=(1,),
            in_specs=[
                pl.BlockSpec((N, C), lambda i: (0, 0)),
                pl.BlockSpec((C, C_mid), lambda i: (0, 0)),
                pl.BlockSpec((1, C_mid), lambda i: (0, 0)),
                pl.BlockSpec((C_mid, C), lambda i: (0, 0)),
                pl.BlockSpec((1, C), lambda i: (0, 0)),
            ],
            out_specs=pl.BlockSpec((N, C), lambda i: (0, 0)),
        ),
        compiler_params=pltpu.CompilerParams(
            dimension_semantics=("arbitrary",),
        ),
    )(pooled_nc, w1t, b1r, w2t, b2r)

    return gate.reshape(N, C, 1, 1)


def _reference(x, w1, b1, w2, b2):
    N, C, H, W = x.shape
    xm = jnp.mean(x.astype(jnp.float32).reshape(N, C, H * W), axis=-1)   # (N, C)
    h = jnp.maximum(xm @ w1.T + b1, 0.0)
    return jax.nn.sigmoid(h @ w2.T + b2).reshape(N, C, 1, 1)


if __name__ == "__main__":
    # Small, deterministic setup consistent with SE(in_chnls=4, ratio=1)
    N, C, ratio = 2, 4, 1
    C_mid = C // ratio

    key = jax.random.PRNGKey(0)
    kx1, kx2, kw1, kb1, kw2, kb2 = jax.random.split(key, 6)

    # Deterministic parameter init (PyTorch-conv-like uniform bounds)
    bound1 = 1.0 / jnp.sqrt(C * 1.0)
    w1 = jax.random.uniform(kw1, (C_mid, C), jnp.float32, -bound1, bound1)
    b1 = jax.random.uniform(kb1, (C_mid,), jnp.float32, -bound1, bound1)
    bound2 = 1.0 / jnp.sqrt(C_mid * 1.0)
    w2 = jax.random.uniform(kw2, (C, C_mid), jnp.float32, -bound2, bound2)
    b2 = jax.random.uniform(kb2, (C,), jnp.float32, -bound2, bound2)

    # Case 1: H*W multiple of the tile (16x16, hw_tile=128) -> exercises the
    # multi-step spatial accumulation + pl.when epilogue path (grid = (2, 2)).
    x1 = jax.random.normal(kx1, (N, C, 16, 16), dtype=jnp.float32)
    out1 = jax.block_until_ready(se_forward(x1, w1, b1, w2, b2, hw_tile=128))
    ref1 = _reference(x1, w1, b1, w2, b2)
    assert out1.shape == (N, C, 1, 1)
    assert jnp.allclose(out1, ref1, atol=1e-5), "mismatch (even spatial)"

    # Case 2: ragged spatial size (9x9 -> HW=81, not a multiple of 128) ->
    # exercises the in-kernel OOB-lane masking path with no wrapper pad.
    x2 = jax.random.normal(kx2, (N, C, 9, 9), dtype=jnp.float32)
    out2 = jax.block_until_ready(se_forward(x2, w1, b1, w2, b2))
    ref2 = _reference(x2, w1, b1, w2, b2)
    assert out2.shape == (N, C, 1, 1)
    assert jnp.allclose(out2, ref2, atol=1e-5), "mismatch (ragged spatial)"

    print("KERNEL_OK")
</pallas_src>

<mosaic_0001>
module attributes {stable_mosaic.version = 11 : i64} {
  func.func @_pool_kernel(%arg0: i32, %arg1: i32, %arg2: memref<1x4x128xf32, #tpu.memory_space<vmem>>, %arg3: memref<1x4x1xf32, #tpu.memory_space<vmem>>, %arg4: memref<4x1xf32, #tpu.memory_space<vmem>>) attributes {dimension_semantics = [#tpu.dimension_semantics<parallel>, #tpu.dimension_semantics<arbitrary>], iteration_bounds = array<i64: 2, 2>, scalar_prefetch = 0 : i64, scratch_operands = 1 : i64, tpu.core_type = #tpu.core_type<tc>, window_params = [{transform_indices = @transform_0, window_bounds = array<i64: 1, 4, 128>}, {transform_indices = @transform_1, window_bounds = array<i64: 1, 4, 1>}]} {
    %c0_i32 = arith.constant 0 : i32
    %0 = arith.cmpi eq, %arg1, %c0_i32 : i32
    %1 = arith.extui %0 : i1 to i32
    %c0_i32_0 = arith.constant 0 : i32
    %2 = arith.cmpi ne, %1, %c0_i32_0 : i32
    scf.if %2 {
      %cst_8 = arith.constant 0.000000e+00 : f32
      %13 = vector.broadcast %cst_8 : f32 to vector<4x1xf32>
      %c0_9 = arith.constant 0 : index
      %c0_10 = arith.constant 0 : index
      %14 = vector.load %arg4[%c0_9, %c0_10] : memref<4x1xf32, #tpu.memory_space<vmem>>, vector<4x1xf32>
      tpu.vector_store %arg4[%c0_9, %c0_10], %13 {strides = array<i32>} : memref<4x1xf32, #tpu.memory_space<vmem>>, vector<4x1xf32>,
    } else {
    }
    %c0 = arith.constant 0 : index
    %c0_1 = arith.constant 0 : index
    %c0_2 = arith.constant 0 : index
    %3 = vector.load %arg2[%c0, %c0_1, %c0_2] : memref<1x4x128xf32, #tpu.memory_space<vmem>>, vector<1x4x128xf32>
    %4 = vector.shape_cast %3 : vector<1x4x128xf32> to vector<4x128xf32>
    %c0_3 = arith.constant 0 : index
    %c0_4 = arith.constant 0 : index
    %5 = vector.load %arg4[%c0_3, %c0_4] : memref<4x1xf32, #tpu.memory_space<vmem>>, vector<4x1xf32>
    %cst = arith.constant dense<0.000000e+00> : vector<4xf32>
    %6 = vector.multi_reduction <add>, %4, %cst [1] : vector<4x128xf32> to vector<4xf32>
    %7 = vector.shape_cast %6 : vector<4xf32> to vector<4x1xf32>
    %8 = arith.addf %5, %7 : vector<4x1xf32>
    %c0_5 = arith.constant 0 : index
    %c0_6 = arith.constant 0 : index
    %9 = vector.load %arg4[%c0_5, %c0_6] : memref<4x1xf32, #tpu.memory_space<vmem>>, vector<4x1xf32>
    tpu.vector_store %arg4[%c0_5, %c0_6], %8 {strides = array<i32>} : memref<4x1xf32, #tpu.memory_space<vmem>>, vector<4x1xf32>,
    %c1_i32 = arith.constant 1 : i32
    %10 = arith.cmpi eq, %arg1, %c1_i32 : i32
    %11 = arith.extui %10 : i1 to i32
    %c0_i32_7 = arith.constant 0 : i32
    %12 = arith.cmpi ne, %11, %c0_i32_7 : i32
    scf.if %12 {
      %c0_8 = arith.constant 0 : index
      %c0_9 = arith.constant 0 : index
      %13 = vector.load %arg4[%c0_8, %c0_9] : memref<4x1xf32, #tpu.memory_space<vmem>>, vector<4x1xf32>
      %cst_10 = arith.constant 3.906250e-03 : f32
      %14 = vector.broadcast %cst_10 : f32 to vector<4x1xf32>
      %15 = arith.mulf %13, %14 : vector<4x1xf32>
      %16 = vector.shape_cast %15 : vector<4x1xf32> to vector<1x4x1xf32>
      %c0_11 = arith.constant 0 : index
      %c0_12 = arith.constant 0 : index
      %c0_13 = arith.constant 0 : index
      %17 = vector.load %arg3[%c0_11, %c0_12, %c0_13] : memref<1x4x1xf32, #tpu.memory_space<vmem>>, vector<1x4x1xf32>
      tpu.vector_store %arg3[%c0_11, %c0_12, %c0_13], %16 {strides = array<i32>} : memref<1x4x1xf32, #tpu.memory_space<vmem>>, vector<1x4x1xf32>,
    } else {
    }
    return
  }
  func.func @transform_0(%arg0: i32, %arg1: i32) -> (i32, i32, i32) {
    %c0_i32 = arith.constant 0 : i32
    %c0_i32_0 = arith.constant 0 : i32
    return %arg0, %c0_i32, %arg1 : i32, i32, i32
  }
  func.func @transform_1(%arg0: i32, %arg1: i32) -> (i32, i32, i32) {
    %c0_i32 = arith.constant 0 : i32
    %c0_i32_0 = arith.constant 0 : i32
    %c0_i32_1 = arith.constant 0 : i32
    return %arg0, %c0_i32, %c0_i32_0 : i32, i32, i32
  }
}

</mosaic_0001>

<llo_original>
// kernel: tpu_custom_call.1
$region0: #{tpu_custom_call.1}
  #allocation0 [shape = 'u32[]', space=smem, size = 0x4, offset = 0x4, fixed_abs, tag = 'smem constant byte address 0x4 - core index']
  #allocation1 [shape = 'u32[144,128]{1,0:T(1,128)}', space=vmem, size = 0x12000, scoped, tag = 'internal scratch']
  #allocation2 [shape = 'f32[4,1]{1,0:T(4,128)}', space=vmem, size = 0x800, scoped, tag = 'scratch operand']
  %s0 = inlined_call_operand.hbm [shape: f32[2,4,256], index: 0, kind: input, shape index: {}]
  %s1 = inlined_call_operand.vmem [shape: f32[2,4,1], index: 1, kind: output, shape index: {}]
  %s2 = sld [smem:[#allocation0]]
  $region49: #{tpu_custom_call.1} parent=0
    _
  %s4 = ssub.s32 1, %s2
  %s5 = scalar_select 0, %s4, %s2
  $region1: #{tpu_custom_call.1} parent=0
    #allocation3 [shape = 'u8[4096]{0}', space=vmem, size = 0x1000, scoped, tag = 'input window, operand 0']
    #allocation4 [shape = 's32[2]{0}', space=sflag, size = 0x8, scoped, tag = 'scoped memory for tpu_custom_call.1']
    %6 = vsyncpa [#allocation4], 0
    %s7 = scalar_lea.sflag [#allocation4], 1
    %8 = vsyncpa %s7, 0
    loop: start=0, step=1, limit=6
    $region2: #{tpu_custom_call.1} parent=1 // loop_pre_header
      _
    $region3: #{tpu_custom_call.1} parent=1 // loop_header
      %s10 = sphi 0, %s14
      %p11 = scmp.ge.s32.totalorder %s10, 6
      %s17 = sphi 0, %s29
      %s18 = sphi 0, %s25
      %s19 = sphi 0, %s17
      %s20 = sphi 0, %s18
      %s21 = sphi 0, %s19
      %s22 = sphi 0, %s20
      %s34 = sphi 0, %s36
      %s37 = sphi 0, %s34
      %s38 = sphi 0, %s37
      %s54 = sphi 0, %s38
      %s60 = sphi 0, %s62
      %s63 = sphi 0, %s60
      %s64 = sphi 0, %s63
      %s80 = sphi 0, %s64
    $region4: #{tpu_custom_call.1} parent=1 // loop_header_branch
      %13 = sbr.rel (%p11) target = $region8
    $region5: #{tpu_custom_call.1} parent=1 // loop_body
      %s15 = ssub.s32 %s10, 1
      %s16 = ssub.s32 %s10, 2
      %s23 = sadd.s32 1, %s18
      %p24 = scmp.ge.s32.totalorder %s23, 2
      %s25 = scalar_select %p24, 0, %s23
      %s26 = sadd.s32 1, %s17
      %s27 = scalar_select %p24, %s26, %s17
      %p28 = scmp.ge.s32.totalorder %s27, 2
      %s29 = scalar_select %p28, 0, %s27
      %s30 = ssub.s32 %s17, %s29
      %s31 = ssub.s32 %s18, %s25
      %s32 = sor.u32 %s30, %s31
      %p33 = scmp.eq.s32.totalorder %s32, 0
      %s35 = sadd.s32 %s34, 1
      %s36 = scalar_select %p33, %s34, %s35
      %p39 = pneg %p33
      %p40 = scmp.eq.s32.totalorder %s10, 3
      %p41 = por %p39, %p40
      %p42 = scmp.ne.s32.totalorder %s34, %s37
      %p43 = scmp.eq.s32.totalorder %s10, 0
      %p44 = por %p42, %p43
      %p45 = scmp.ne.s32.totalorder %s34, %s37
      %p46 = scmp.eq.s32.totalorder %s15, 3
      %p47 = por %p45, %p46
      %p48 = scmp.ne.s32.totalorder %s37, %s38
      %p49 = scmp.eq.s32.totalorder %s15, 0
      %p50 = por %p48, %p49
      %p51 = scmp.ne.s32.totalorder %s37, %s38
      %p52 = scmp.eq.s32.totalorder %s16, 3
      %p53 = por %p51, %p52
      %p55 = scmp.ne.s32.totalorder %s38, %s54
      %p56 = scmp.eq.s32.totalorder %s16, 0
      %p57 = por %p55, %p56
      %s58 = ssub.s32 %s17, %s29
      %p59 = scmp.eq.s32.totalorder %s58, 0
      %s61 = sadd.s32 %s60, 1
      %s62 = scalar_select %p59, %s60, %s61
      %p65 = pneg %p59
      %p66 = scmp.eq.s32.totalorder %s10, 3
      %p67 = por %p65, %p66
      %p68 = scmp.ne.s32.totalorder %s60, %s63
      %p69 = scmp.eq.s32.totalorder %s10, 0
      %p70 = por %p68, %p69
      %p71 = scmp.ne.s32.totalorder %s60, %s63
      %p72 = scmp.eq.s32.totalorder %s15, 3
      %p73 = por %p71, %p72
      %p74 = scmp.ne.s32.totalorder %s63, %s64
      %p75 = scmp.eq.s32.totalorder %s15, 0
      %p76 = por %p74, %p75
      %p77 = scmp.ne.s32.totalorder %s63, %s64
      %p78 = scmp.eq.s32.totalorder %s16, 3
      %p79 = por %p77, %p78
      %p81 = scmp.ne.s32.totalorder %s64, %s80
      %p82 = scmp.eq.s32.totalorder %s16, 0
      %p83 = por %p81, %p82
      %p84 = scmp.le.s32.totalorder 1, %s10
      %p85 = scmp.lt.s32.totalorder %s10, 5
      %p86 = pnand %p84, %p85
      %p87 = pneg %p86
      // Predicated region
      $region9: #{tpu_custom_call.1} parent=5 // pred_check
        _
      $region10: #{tpu_custom_call.1} parent=5 // pred_check_branch
        %89 = sbr.rel (%p86) target = $region12
      $region11: #{tpu_custom_call.1} parent=5 // pred_region
        %s90 = ssub.s32 %s10, 1
      $region12: #{tpu_custom_call.1} parent=5 // pred_fallthru
        _
      %p91 = scmp.lt.s32.totalorder %s10, 4
      // Predicated region
      $region13: #{tpu_custom_call.1} parent=5 // pred_check
        %p92 = pneg %p91
      $region14: #{tpu_custom_call.1} parent=5 // pred_check_branch
        %94 = sbr.rel (%p92) target = $region16
      $region15: #{tpu_custom_call.1} parent=5 // pred_region
        // Predicated region
        $region17: #{tpu_custom_call.1} parent=15 // pred_check
          %p95 = pneg %p44
        $region18: #{tpu_custom_call.1} parent=15 // pred_check_branch
          %97 = sbr.rel (%p95) target = $region20
        $region19: #{tpu_custom_call.1} parent=15 // pred_region
          %s98 = sand.u32 %s34, 1
          %s99 = scalar_lea.sflag [#allocation4], %s98
          %s100 = sand.u32 %s34, 1
          %s101 = smul.addr %s100, 4
          %s102 = scalar_lea.vmem [#allocation3], %s101
          %s104 = ssub.s32 64, 64
          %105 = vsyncadd %s99, %s104
          %s106 = smul.addr %s17, 2
          %s107 = sadd.s32 %s18, %s106
          %s108 = smul.addr %s107, 64
          %s109 = scalar_lea.hbm %s0, %s108
          %s111 = sshll.u32 %s102, 4
          %s112 = int_to_ptr.vmem [resolvable:$true] %s111
          %114 = dma.hbm_to_vmem [thread:$0]  %s109, 64, %s112, %s99
        $region20: #{tpu_custom_call.1} parent=15 // pred_fallthru
          _
      $region16: #{tpu_custom_call.1} parent=5 // pred_fallthru
        _
      %p115 = scmp.le.s32.totalorder 1, %s10
      %p116 = scmp.lt.s32.totalorder %s10, 5
      %p117 = pnand %p115, %p116
      %p118 = pneg %p117
      // Predicated region
      $region21: #{tpu_custom_call.1} parent=5 // pred_check
        _
      $region22: #{tpu_custom_call.1} parent=5 // pred_check_branch
        %120 = sbr.rel (%p117) target = $region24
      $region23: #{tpu_custom_call.1} parent=5 // pred_region
        %s121 = ssub.s32 %s10, 1
        %s122 = sand.u32 %s37, 1
        %s123 = scalar_lea.sflag [#allocation4], %s122
        %s124 = sand.u32 %s37, 1
        %s125 = smul.addr %s124, 4
        %s126 = scalar_lea.vmem [#allocation3], %s125
        // Predicated region
        $region25: #{tpu_custom_call.1} parent=23 // pred_check
          %p127 = pneg %p50
        $region26: #{tpu_custom_call.1} parent=23 // pred_check_branch
          %129 = sbr.rel (%p127) target = $region28
        $region27: #{tpu_custom_call.1} parent=23 // pred_region
          %130 = dma.done %s123, 64
        $region28: #{tpu_custom_call.1} parent=23 // pred_fallthru
          _
        %s131 = sand.u32 %s37, 1
        %s132 = scalar_lea.sflag [#allocation4], %s131
        %s133 = sand.u32 %s37, 1
        %s134 = smul.addr %s133, 4
        %s135 = scalar_lea.vmem [#allocation3], %s134
        %p136 = pneg %p50
        %p137 = pneg %p47
        %p138 = pneg %p76
        %p139 = pneg %p73
        %p140 = scmp.lt.s32.totalorder %s19, 1
        %s141 = scalar_select %p140, %s19, 1
        %s142 = smul.addr %s141, 4
        %s143 = scalar_lea.vmem %s1, %s142
        %p144 = scmp.lt.s32.totalorder %s19, 1
        %s145 = scalar_select %p144, %s19, 1
        %s146 = smul.addr %s145, 4
        %s147 = scalar_lea.vmem %s1, %s146
        %p148 = scmp.eq.s32.totalorder %s20, 0
        // Predicated region
        $region29: #{tpu_custom_call.1} parent=23 // pred_check
          %p149 = pneg %p148
        $region30: #{tpu_custom_call.1} parent=23 // pred_check_branch
          %151 = sbr.rel (%p149) target = $region32
        $region31: #{tpu_custom_call.1} parent=23 // pred_region
          %vm152 = vcmask 3072
          %153 = vst.msk [vmem:[#allocation2] sm:$0xf] %vm152, 0.0
        $region32: #{tpu_custom_call.1} parent=23 // pred_fallthru
          _
        %v154 = vld [vmem:[%s126] sm:$0xf]
        %v155 = vld [vmem:[#allocation2] sm:$0xf]
        %vm156 = vcmask 1043456
        %v157 = vsel %vm156, %v154, 0.0
        %158 = vadd.xlane.f32.xlu0 %v157
        %v159 = vpop.xlane.xlu0 %158
        %v160 = vadd.f32 %v155, %v159
        %vm161 = vcmask 3072
        %162 = vst.msk [vmem:[#allocation2] sm:$0xf] %vm161, %v160
        %p163 = scmp.eq.s32.totalorder %s20, 1
        // Predicated region
        $region33: #{tpu_custom_call.1} parent=23 // pred_check
          %p164 = pneg %p163
        $region34: #{tpu_custom_call.1} parent=23 // pred_check_branch
          %166 = sbr.rel (%p164) target = $region36
        $region35: #{tpu_custom_call.1} parent=23 // pred_region
          %v167 = vld [vmem:[#allocation2] sm:$0xf]
          %v168 = vmul.f32 %v167, 0.00390625
          %169 = vst.msk [vmem:[%s147] sm:$0xf] %vm161, %v168
        $region36: #{tpu_custom_call.1} parent=23 // pred_fallthru
          _
        %p170 = scmp.lt.s32.totalorder %s19, 1
        %s171 = scalar_select %p170, %s19, 1
        %s172 = smul.addr %s171, 4
        %s173 = scalar_lea.vmem %s1, %s172
        // Predicated region
        $region37: #{tpu_custom_call.1} parent=23 // pred_check
          %p174 = pneg %p73
        $region38: #{tpu_custom_call.1} parent=23 // pred_check_branch
          %176 = sbr.rel (%p174) target = $region40
        $region39: #{tpu_custom_call.1} parent=23 // pred_region
          _
        $region40: #{tpu_custom_call.1} parent=23 // pred_fallthru
          _
      $region24: #{tpu_custom_call.1} parent=5 // pred_fallthru
        _
      %p177 = scmp.le.s32.totalorder 2, %s10
      // Predicated region
      $region41: #{tpu_custom_call.1} parent=5 // pred_check
        %p178 = pneg %p177
      $region42: #{tpu_custom_call.1} parent=5 // pred_check_branch
        %180 = sbr.rel (%p178) target = $region44
      $region43: #{tpu_custom_call.1} parent=5 // pred_region
        %s181 = ssub.s32 %s10, 2
        // Predicated region
        $region45: #{tpu_custom_call.1} parent=43 // pred_check
          %p182 = pneg %p79
        $region46: #{tpu_custom_call.1} parent=43 // pred_check_branch
          %184 = sbr.rel (%p182) target = $region48
        $region47: #{tpu_custom_call.1} parent=43 // pred_region
          %p185 = scmp.lt.s32.totalorder %s21, 1
          %s186 = scalar_select %p185, %s21, 1
          %s187 = smul.addr %s186, 4
          %s188 = scalar_lea.vmem %s1, %s187
        $region48: #{tpu_custom_call.1} parent=43 // pred_fallthru
          _
      $region44: #{tpu_custom_call.1} parent=5 // pred_fallthru
        _
    $region6: #{tpu_custom_call.1} parent=1 // loop_footer
      %s14 = sadd.s32 1, %s10
    $region7: #{tpu_custom_call.1} parent=1 // loop_footer_branch
      %9 = sbr.rel target = $region3
    $region8: #{tpu_custom_call.1} parent=1 // loop_exit
      _
    %189 = vsyncpa [#allocation4], 1
    %s190 = scalar_lea.sflag [#allocation4], 1
    %191 = vsyncpa %s190, 1

</llo_original>
